<compile_context>
chip_gen: v5e
topology: v5e:2x2
jax: 0.10.0
libtpu: 0.0.40
codegen_flags: <defaults>
</compile_context>

<pallas_src>
import functools

import jax
import jax.numpy as jnp
from jax.experimental import pallas as pl
from jax.experimental.pallas import tpu as pltpu


def _round_up(x, m):
    return (x + m - 1) // m * m


def _cdiv(a, b):
    return -(-a // b)


def _vmem_capacity_bytes():
    try:
        info = pltpu.get_tpu_info()
        cap = getattr(info, "vmem_capacity_bytes", None)
        if cap:
            return int(cap)
    except Exception:
        pass
    return 64 << 20  # conservative default (v7x); v5e/v6e have 128 MiB


def _gp_kernel(g_ref, o_ref, *, d_total, dt, nd_per):
    """Accumulate per-row sum-of-squares of one (bt, dt) gradient tile.

    grid = (d_split, b_tile, d_tile). The output block index is constant
    across the innermost ("arbitrary") d_tile axis, so the output block is
    VMEM-resident and doubles as the f32 accumulator.
    """
    s = pl.program_id(0)     # D-split index ("parallel": feeds both TCs on v7x)
    di = pl.program_id(2)    # D tile within this split (innermost, "arbitrary")

    @pl.when(di == 0)
    def _init():
        o_ref[...] = jnp.zeros_like(o_ref)

    g = g_ref[...].astype(jnp.float32)          # (bt, dt)
    start = (s * nd_per + di) * dt              # global column of lane 0

    # Fast path: tile fully inside [0, d_total) -> no masking work on the VPU.
    @pl.when(start + dt <= d_total)
    def _full():
        o_ref[...] += jnp.sum(g * g, axis=-1, keepdims=True)

    # Ragged / fully out-of-range tile: zero the phantom lanes before summing.
    @pl.when(start + dt > d_total)
    def _ragged():
        col = jax.lax.broadcasted_iota(jnp.int32, g.shape, 1) + start
        gg = jnp.where(col < d_total, g * g, 0.0)
        o_ref[...] += jnp.sum(gg, axis=-1, keepdims=True)


def _per_sample_penalty(grad_interp, *, target_tile_bytes=None):
    """Returns (||g_b||_2 - 1)^2 per sample; the (B, D) reduction runs in Pallas."""
    b = grad_interp.shape[0]
    g = grad_interp.reshape(b, -1)
    d = g.shape[1]
    itemsize = jnp.dtype(g.dtype).itemsize

    vmem_cap = _vmem_capacity_bytes()
    if target_tile_bytes is None:
        # ~12.8 MiB on a 64 MiB-VMEM part (v7x), 16 MiB on 128 MiB parts.
        target_tile_bytes = min(max(vmem_cap // 5, 4 << 20), 16 << 20)

    # Batch tile: packed-sublane minimum for the dtype (8 f32 / 16 bf16 / 32 i8);
    # grow to 16/32 only when it introduces no phantom rows.
    sub = max(8, 32 // itemsize)
    b8 = _round_up(b, sub)
    bt = sub
    for cand in (32, 16):
        if cand >= sub and b8 % cand == 0:
            bt = cand
            break
    nb = _cdiv(b, bt)
    b_ceil = nb * bt

    # Feature tile: lane-dense multiple of 128 sized for ~target_tile_bytes.
    dt = max(128, (target_tile_bytes // (bt * itemsize)) // 128 * 128)
    dt = min(dt, _round_up(d, 128))
    nd_total = _cdiv(d, dt)

    # v7x has 2 TensorCores: guarantee >= 2 blocks on a parallel axis by
    # splitting D in half when there is only a single batch tile.
    n_split = 2 if (nb < 2 and nd_total >= 2) else 1
    nd_per = _cdiv(nd_total, n_split)

    tile_bytes = bt * dt * itemsize
    # Double-buffered input + headroom, capped at 3/4 of physical VMEM.
    vmem_limit = int(min(max(5 * tile_bytes, 32 << 20), (vmem_cap * 3) // 4))

    def in_index(s, bi, di):
        # Clamp so a fully out-of-range tile (odd D split) re-reads a valid
        # block; its contribution is masked to zero inside the kernel.
        return (bi, jnp.minimum(s * nd_per + di, nd_total - 1))

    out = pl.pallas_call(
        functools.partial(_gp_kernel, d_total=d, dt=dt, nd_per=nd_per),
        out_shape=jax.ShapeDtypeStruct((n_split, b_ceil, 1), jnp.float32),
        grid_spec=pltpu.PrefetchScalarGridSpec(
            num_scalar_prefetch=0,
            grid=(n_split, nb, nd_per),
            in_specs=[pl.BlockSpec((bt, dt), in_index)],
            out_specs=pl.BlockSpec((None, bt, 1), lambda s, bi, di: (s, bi, 0)),
        ),
        compiler_params=pltpu.CompilerParams(
            dimension_semantics=("parallel", "parallel", "arbitrary"),
            vmem_limit_bytes=vmem_limit,
        ),
    )(g)

    # Tiny epilogue: combine D splits, drop phantom rows, sqrt, penalty.
    sumsq = jnp.sum(out[:, :b, 0], axis=0)
    return (jnp.sqrt(sumsq) - 1.0) ** 2


def gradient_penalty_loss(critic_fn, interp):
    """Forward pass of GradientPenaltyLoss.

    interp_crit = critic_fn(interp); grad_interp = d(sum interp_crit)/d interp
    loss = mean((||grad_interp||_2 per sample - 1)^2)
    """
    # TODO(synk): torch.autograd.grad over an arbitrary external graph has no
    # Pallas equivalent; the VJP (grad_outputs = ones) is taken with jax.vjp
    # here, and only the norm / penalty reduction runs in the Pallas kernel.
    interp_crit, vjp_fn = jax.vjp(critic_fn, interp)
    grad_outputs = jnp.ones_like(interp_crit)
    (grad_interp,) = vjp_fn(grad_outputs)
    penalty = _per_sample_penalty(grad_interp)
    return jnp.mean(penalty)


if __name__ == "__main__":
    key = jax.random.PRNGKey(0)
    B, C, H, W = 2, 4, 16, 16
    k1, k2, k3, k4 = jax.random.split(key, 4)

    interp = jax.random.uniform(k1, (B, C, H, W), dtype=jnp.float32)
    w = jax.random.normal(k2, (C * H * W,), dtype=jnp.float32) * 0.05

    def critic(x):
        # Simple deterministic in-script "critic": scalar score per sample.
        flat = x.reshape(x.shape[0], -1)
        s = flat @ w
        return jnp.tanh(s) + 0.1 * jnp.sum(flat * flat, axis=-1)

    loss = gradient_penalty_loss(critic, interp)
    jax.block_until_ready(loss)

    # Pure-JAX reference for the full forward pass.
    crit_ref, vjp_fn = jax.vjp(critic, interp)
    (g_ref,) = vjp_fn(jnp.ones_like(crit_ref))
    gflat = g_ref.reshape(B, -1)
    ref = jnp.mean((jnp.sqrt(jnp.sum(gflat * gflat, axis=1)) - 1.0) ** 2)
    assert jnp.allclose(loss, ref, atol=1e-5, rtol=1e-5), (loss, ref)

    # Extra checks: ragged B / ragged D masking, and the dual-core D-split
    # path (tiny tile target forces several D tiles with an odd split).
    def _ref_penalty(gm):
        return (jnp.linalg.norm(gm.reshape(gm.shape[0], -1), axis=1) - 1.0) ** 2

    g2 = jax.random.normal(k3, (5, 300), dtype=jnp.float32)
    p2 = _per_sample_penalty(g2)
    assert jnp.allclose(p2, _ref_penalty(g2), atol=1e-4, rtol=1e-4), (p2,)

    g3 = jax.random.normal(k4, (3, 4600), dtype=jnp.float32)
    p3 = _per_sample_penalty(g3, target_tile_bytes=16 * 1024)
    assert jnp.allclose(p3, _ref_penalty(g3), atol=1e-4, rtol=1e-4), (p3,)

    jax.block_until_ready((p2, p3))
    print("KERNEL_OK")
</pallas_src>

<mosaic_0001>
module attributes {stable_mosaic.version = 11 : i64} {
  func.func @_gp_kernel(%arg0: i32, %arg1: i32, %arg2: i32, %arg3: memref<8x1024xf32, #tpu.memory_space<vmem>>, %arg4: memref<1x8x1xf32, #tpu.memory_space<vmem>>) attributes {dimension_semantics = [#tpu.dimension_semantics<parallel>, #tpu.dimension_semantics<parallel>, #tpu.dimension_semantics<arbitrary>], iteration_bounds = array<i64: 1, 1, 1>, scalar_prefetch = 0 : i64, scratch_operands = 0 : i64, tpu.core_type = #tpu.core_type<tc>, window_params = [{transform_indices = @transform_0, window_bounds = array<i64: 8, 1024>}, {transform_indices = @transform_1, window_bounds = array<i64: 1, 8, 1>}]} {
    %c0_i32 = arith.constant 0 : i32
    %0 = arith.cmpi eq, %arg2, %c0_i32 : i32
    %1 = arith.extui %0 : i1 to i32
    %c0_i32_0 = arith.constant 0 : i32
    %2 = arith.cmpi ne, %1, %c0_i32_0 : i32
    scf.if %2 {
      %cst = arith.constant 0.000000e+00 : f32
      %15 = vector.broadcast %cst : f32 to vector<8x1xf32>
      %c0_8 = arith.constant 0 : index
      %c0_9 = arith.constant 0 : index
      %c0_10 = arith.constant 0 : index
      %16 = vector.load %arg4[%c0_8, %c0_9, %c0_10] : memref<1x8x1xf32, #tpu.memory_space<vmem>>, vector<1x8x1xf32>
      %17 = vector.shape_cast %16 : vector<1x8x1xf32> to vector<8x1xf32>
      %18 = vector.shape_cast %15 : vector<8x1xf32> to vector<1x8x1xf32>
      tpu.vector_store %arg4[%c0_8, %c0_9, %c0_10], %18 {strides = array<i32>} : memref<1x8x1xf32, #tpu.memory_space<vmem>>, vector<1x8x1xf32>,
    } else {
    }
    %c0 = arith.constant 0 : index
    %c0_1 = arith.constant 0 : index
    %3 = vector.load %arg3[%c0, %c0_1] : memref<8x1024xf32, #tpu.memory_space<vmem>>, vector<8x1024xf32>
    %c1_i32 = arith.constant 1 : i32
    %4 = arith.muli %arg0, %c1_i32 : i32
    %5 = arith.addi %4, %arg2 : i32
    %c1024_i32 = arith.constant 1024 : i32
    %6 = arith.muli %5, %c1024_i32 : i32
    %c1024_i32_2 = arith.constant 1024 : i32
    %7 = arith.addi %6, %c1024_i32_2 : i32
    %c1024_i32_3 = arith.constant 1024 : i32
    %8 = arith.cmpi sle, %7, %c1024_i32_3 : i32
    %9 = arith.extui %8 : i1 to i32
    %c0_i32_4 = arith.constant 0 : i32
    %10 = arith.cmpi ne, %9, %c0_i32_4 : i32
    scf.if %10 {
      %c0_8 = arith.constant 0 : index
      %c0_9 = arith.constant 0 : index
      %c0_10 = arith.constant 0 : index
      %15 = vector.load %arg4[%c0_8, %c0_9, %c0_10] : memref<1x8x1xf32, #tpu.memory_space<vmem>>, vector<1x8x1xf32>
      %16 = vector.shape_cast %15 : vector<1x8x1xf32> to vector<8x1xf32>
      %17 = arith.mulf %3, %3 : vector<8x1024xf32>
      %cst = arith.constant dense<0.000000e+00> : vector<8xf32>
      %18 = vector.multi_reduction <add>, %17, %cst [1] : vector<8x1024xf32> to vector<8xf32>
      %19 = vector.shape_cast %18 : vector<8xf32> to vector<8x1xf32>
      %20 = arith.addf %16, %19 : vector<8x1xf32>
      %c0_11 = arith.constant 0 : index
      %c0_12 = arith.constant 0 : index
      %c0_13 = arith.constant 0 : index
      %21 = vector.load %arg4[%c0_11, %c0_12, %c0_13] : memref<1x8x1xf32, #tpu.memory_space<vmem>>, vector<1x8x1xf32>
      %22 = vector.shape_cast %21 : vector<1x8x1xf32> to vector<8x1xf32>
      %23 = vector.shape_cast %20 : vector<8x1xf32> to vector<1x8x1xf32>
      tpu.vector_store %arg4[%c0_11, %c0_12, %c0_13], %23 {strides = array<i32>} : memref<1x8x1xf32, #tpu.memory_space<vmem>>, vector<1x8x1xf32>,
    } else {
    }
    %c1024_i32_5 = arith.constant 1024 : i32
    %11 = arith.addi %6, %c1024_i32_5 : i32
    %c1024_i32_6 = arith.constant 1024 : i32
    %12 = arith.cmpi sgt, %11, %c1024_i32_6 : i32
    %13 = arith.extui %12 : i1 to i32
    %c0_i32_7 = arith.constant 0 : i32
    %14 = arith.cmpi ne, %13, %c0_i32_7 : i32
    scf.if %14 {
      %15 = tpu.iota {dimensions = array<i32: 1>} : vector<8x1024xi32>
      %16 = vector.broadcast %6 : i32 to vector<8x1024xi32>
      %17 = arith.addi %15, %16 : vector<8x1024xi32>
      %c1024_i32_8 = arith.constant 1024 : i32
      %18 = vector.broadcast %c1024_i32_8 : i32 to vector<8x1024xi32>
      %19 = arith.cmpi slt, %17, %18 : vector<8x1024xi32>
      %20 = arith.mulf %3, %3 : vector<8x1024xf32>
      %cst = arith.constant 0.000000e+00 : f32
      %21 = vector.broadcast %cst : f32 to vector<8x1024xf32>
      %22 = arith.select %19, %20, %21 : vector<8x1024xi1>, vector<8x1024xf32>
      %c0_9 = arith.constant 0 : index
      %c0_10 = arith.constant 0 : index
      %c0_11 = arith.constant 0 : index
      %23 = vector.load %arg4[%c0_9, %c0_10, %c0_11] : memref<1x8x1xf32, #tpu.memory_space<vmem>>, vector<1x8x1xf32>
      %24 = vector.shape_cast %23 : vector<1x8x1xf32> to vector<8x1xf32>
      %cst_12 = arith.constant dense<0.000000e+00> : vector<8xf32>
      %25 = vector.multi_reduction <add>, %22, %cst_12 [1] : vector<8x1024xf32> to vector<8xf32>
      %26 = vector.shape_cast %25 : vector<8xf32> to vector<8x1xf32>
      %27 = arith.addf %24, %26 : vector<8x1xf32>
      %c0_13 = arith.constant 0 : index
      %c0_14 = arith.constant 0 : index
      %c0_15 = arith.constant 0 : index
      %28 = vector.load %arg4[%c0_13, %c0_14, %c0_15] : memref<1x8x1xf32, #tpu.memory_space<vmem>>, vector<1x8x1xf32>
      %29 = vector.shape_cast %28 : vector<1x8x1xf32> to vector<8x1xf32>
      %30 = vector.shape_cast %27 : vector<8x1xf32> to vector<1x8x1xf32>
      tpu.vector_store %arg4[%c0_13, %c0_14, %c0_15], %30 {strides = array<i32>} : memref<1x8x1xf32, #tpu.memory_space<vmem>>, vector<1x8x1xf32>,
    } else {
    }
    return
  }
  func.func @transform_0(%arg0: i32, %arg1: i32, %arg2: i32) -> (i32, i32) {
    %c1_i32 = arith.constant 1 : i32
    %0 = arith.muli %arg0, %c1_i32 : i32
    %1 = arith.addi %0, %arg2 : i32
    %c0_i32 = arith.constant 0 : i32
    %2 = arith.minsi %1, %c0_i32 : i32
    %c0_i32_0 = arith.constant 0 : i32
    return %arg1, %2 : i32, i32
  }
  func.func @transform_1(%arg0: i32, %arg1: i32, %arg2: i32) -> (i32, i32, i32) {
    %c0_i32 = arith.constant 0 : i32
    %c0_i32_0 = arith.constant 0 : i32
    return %arg0, %arg1, %c0_i32 : i32, i32, i32
  }
}

</mosaic_0001>

<llo_original>
// kernel: tpu_custom_call.1
$region0: #{tpu_custom_call.1}
  #allocation0 [shape = 'u32[]', space=smem, size = 0x4, offset = 0x4, fixed_abs, tag = 'smem constant byte address 0x4 - core index']
  #allocation1 [shape = 'u32[72,128]{1,0:T(1,128)}', space=vmem, size = 0x9000, scoped, tag = 'internal scratch']
  %s0 = inlined_call_operand.hbm [shape: f32[2,1024], index: 0, kind: input, shape index: {}]
  %s1 = inlined_call_operand.vmem [shape: f32[1,8,1], index: 1, kind: output, shape index: {}]
  %s2 = sld [smem:[#allocation0]]
  $region30: #{tpu_custom_call.1} parent=0
    _
  %s4 = ssub.s32 1, %s2
  %s5 = scalar_select 0, %s4, %s2
  $region1: #{tpu_custom_call.1} parent=0
    #allocation2 [shape = 'u8[32768]{0}', space=vmem, size = 0x8000, scoped, tag = 'input window, operand 0, single buffered']
    #allocation3 [shape = 's32[1]{0}', space=sflag, size = 0x4, scoped, tag = 'scoped memory for tpu_custom_call.1']
    %6 = vsyncpa [#allocation3], 0
    // Predicated region
    $region2: #{tpu_custom_call.1} parent=1 // pred_check
      _
    $region3: #{tpu_custom_call.1} parent=1 // pred_check_branch
      %8 = sbr.rel (0) target = $region5
    $region4: #{tpu_custom_call.1} parent=1 // pred_region
      %s9 = sadd.s32 0, 0
      %p10 = scmp.lt.s32.totalorder %s9, 0
      %s11 = scalar_select %p10, %s9, 0
      %s12 = smul.u32 8, %s11
      %14 = vsyncadd [#allocation3], 768
      %s15 = smul.addr %s12, 2
      %s16 = scalar_lea.hbm %s0, %s15
      %s17 = sshll.u32 %s16, 4
      %s18 = int_to_ptr.hbm [resolvable:$true] %s17
      %s19 = sshll.u32 [#allocation2], 4
      %s20 = int_to_ptr.vmem [resolvable:$true] %s19
      %25 = dma.hbm_to_vmem [thread:$0]  %s18, 256, %s20, [#allocation3], 256, 256, 16
    $region5: #{tpu_custom_call.1} parent=1 // pred_fallthru
      _
    // Predicated region
    $region6: #{tpu_custom_call.1} parent=1 // pred_check
      _
    $region7: #{tpu_custom_call.1} parent=1 // pred_check_branch
      %27 = sbr.rel (0) target = $region9
    $region8: #{tpu_custom_call.1} parent=1 // pred_region
      %29 = dma.done [#allocation3], 1024
    $region9: #{tpu_custom_call.1} parent=1 // pred_fallthru
      _
    %s30 = sadd.s32 0, 0
    %p31 = scmp.lt.s32.totalorder %s30, 0
    %s32 = scalar_select %p31, %s30, 0
    %s33 = smul.u32 8, %s32
    %p34 = scmp.eq.s32.totalorder 0, 0
    // Predicated region
    $region10: #{tpu_custom_call.1} parent=1 // pred_check
      %p35 = pneg %p34
    $region11: #{tpu_custom_call.1} parent=1 // pred_check_branch
      %37 = sbr.rel (%p35) target = $region13
    $region12: #{tpu_custom_call.1} parent=1 // pred_region
      %vm38 = vcmask 7168
      %39 = vst.msk [vmem:[%s1] sm:$0xff] %vm38, 0.0
    $region13: #{tpu_custom_call.1} parent=1 // pred_fallthru
      _
    %v40 = vld [vmem:[#allocation2] sm:$0xff]
    %v41 = vld [vmem:[#allocation2 + $0x8] sm:$0xff]
    %v42 = vld [vmem:[#allocation2 + $0x10] sm:$0xff]
    %v43 = vld [vmem:[#allocation2 + $0x18] sm:$0xff]
    %v44 = vld [vmem:[#allocation2 + $0x20] sm:$0xff]
    %v45 = vld [vmem:[#allocation2 + $0x28] sm:$0xff]
    %v46 = vld [vmem:[#allocation2 + $0x30] sm:$0xff]
    %v47 = vld [vmem:[#allocation2 + $0x38] sm:$0xff]
    %s48 = sadd.s32 0, 0
    %s49 = smul.u32 %s48, 1024
    %s50 = sadd.s32 %s49, 1024
    %p51 = scmp.le.s32.totalorder %s50, 1024
    // Predicated region
    $region14: #{tpu_custom_call.1} parent=1 // pred_check
      %p52 = pneg %p51
    $region15: #{tpu_custom_call.1} parent=1 // pred_check_branch
      %54 = sbr.rel (%p52) target = $region17
    $region16: #{tpu_custom_call.1} parent=1 // pred_region
      %v55 = vld [vmem:[%s1] sm:$0xff]
      %v56 = vmul.f32 %v40, %v40
      %v57 = vmul.f32 %v41, %v41
      %v58 = vmul.f32 %v42, %v42
      %v59 = vmul.f32 %v43, %v43
      %v60 = vmul.f32 %v44, %v44
      %v61 = vmul.f32 %v45, %v45
      %v62 = vmul.f32 %v46, %v46
      %v63 = vmul.f32 %v47, %v47
      %72 = vst [vmem:[#allocation1] ss:$4 sm:$0xff] %v56
      %s73 = scalar_lea.vmem [#allocation1], 1
      %74 = vst [vmem:[%s73] ss:$4 sm:$0xff] %v58
      %s75 = scalar_lea.vmem [#allocation1], 2
      %76 = vst [vmem:[%s75] ss:$4 sm:$0xff] %v60
      %s77 = scalar_lea.vmem [#allocation1], 3
      %78 = vst [vmem:[%s77] ss:$4 sm:$0xff] %v62
      %s79 = scalar_lea.vmem [#allocation1], 32
      %80 = vst [vmem:[%s79] ss:$4 sm:$0xff] %v57
      %s81 = scalar_lea.vmem [#allocation1], 33
      %82 = vst [vmem:[%s81] ss:$4 sm:$0xff] %v59
      %s83 = scalar_lea.vmem [#allocation1], 34
      %84 = vst [vmem:[%s83] ss:$4 sm:$0xff] %v61
      %s85 = scalar_lea.vmem [#allocation1], 35
      %86 = vst [vmem:[%s85] ss:$4 sm:$0xff] %v63
      %v87 = vld.sshfl [vmem:[#allocation1] sm:$0xff pattern:$0x73625140]
      %v88 = vld.sshfl [vmem:[#allocation1 + $0x8] sm:$0xff pattern:$0x73625140]
      %v89 = vld.sshfl [vmem:[#allocation1 + $0x10] sm:$0xff pattern:$0x73625140]
      %v90 = vld.sshfl [vmem:[#allocation1 + $0x18] sm:$0xff pattern:$0x73625140]
      %v91 = vld.sshfl [vmem:[#allocation1 + $0x20] sm:$0xff pattern:$0x73625140]
      %v92 = vld.sshfl [vmem:[#allocation1 + $0x28] sm:$0xff pattern:$0x73625140]
      %v93 = vld.sshfl [vmem:[#allocation1 + $0x30] sm:$0xff pattern:$0x73625140]
      %v94 = vld.sshfl [vmem:[#allocation1 + $0x38] sm:$0xff pattern:$0x73625140]
      %v103 = vadd.f32 %v87, %v88
      %v104 = vadd.f32 %v103, %v89
      %v105 = vadd.f32 %v104, %v90
      %v106 = vadd.f32 %v105, %v91
      %v107 = vadd.f32 %v106, %v92
      %v108 = vadd.f32 %v107, %v93
      %v109 = vadd.f32 %v108, %v94
      %110 = vadd.xlane.f32.xlu0 %v109
      %v111 = vpop.xlane.xlu0 %110
      %v112 = vadd.f32 %v55, %v111
      %vm113 = vcmask 7168
      %114 = vst.msk [vmem:[%s1] sm:$0xff] %vm113, %v112
    $region17: #{tpu_custom_call.1} parent=1 // pred_fallthru
      _
    %p115 = scmp.gt.s32.totalorder %s50, 1024
    // Predicated region
    $region18: #{tpu_custom_call.1} parent=1 // pred_check
      %p116 = pneg %p115
    $region19: #{tpu_custom_call.1} parent=1 // pred_check_branch
      %118 = sbr.rel (%p116) target = $region21
    $region20: #{tpu_custom_call.1} parent=1 // pred_region
      %v119 = vlaneseq
      %v120 = vand.u32 %v119, 127
      %v121 = vadd.s32 %v120, 128
      %v122 = vadd.s32 %v120, 256
      %v123 = vadd.s32 %v120, 384
      %v124 = vadd.s32 %v120, 512
      %v125 = vadd.s32 %v120, 640
      %v126 = vadd.s32 %v120, 768
      %v127 = vadd.s32 %v120, 896
      %v128 = vstv %s49
      %v129 = vadd.s32 %v120, %v128
      %v130 = vadd.s32 %v121, %v128
      %v131 = vadd.s32 %v122, %v128
      %v132 = vadd.s32 %v123, %v128
      %v133 = vadd.s32 %v124, %v128
      %v134 = vadd.s32 %v125, %v128
      %v135 = vadd.s32 %v126, %v128
      %v136 = vadd.s32 %v127, %v128
      %vm137 = vcmp.lt.s32.totalorder %v129, 1024
      %vm138 = vcmp.lt.s32.totalorder %v130, 1024
      %vm139 = vcmp.lt.s32.totalorder %v131, 1024
      %vm140 = vcmp.lt.s32.totalorder %v132, 1024
      %vm141 = vcmp.lt.s32.totalorder %v133, 1024
      %vm142 = vcmp.lt.s32.totalorder %v134, 1024
      %vm143 = vcmp.lt.s32.totalorder %v135, 1024
      %vm144 = vcmp.lt.s32.totalorder %v136, 1024
      %v145 = vmul.f32 %v40, %v40
      %v146 = vmul.f32 %v41, %v41
      %v147 = vmul.f32 %v42, %v42
      %v148 = vmul.f32 %v43, %v43
      %v149 = vmul.f32 %v44, %v44
      %v150 = vmul.f32 %v45, %v45
      %v151 = vmul.f32 %v46, %v46
      %v152 = vmul.f32 %v47, %v47
      %161 = vst [vmem:[#allocation1] ss:$4 sm:$0xff] %v145
      %s162 = scalar_lea.vmem [#allocation1], 1
      %163 = vst [vmem:[%s162] ss:$4 sm:$0xff] %v147
      %s164 = scalar_lea.vmem [#allocation1], 2
      %165 = vst [vmem:[%s164] ss:$4 sm:$0xff] %v149
      %s166 = scalar_lea.vmem [#allocation1], 3
      %167 = vst [vmem:[%s166] ss:$4 sm:$0xff] %v151
      %s168 = scalar_lea.vmem [#allocation1], 32
      %169 = vst [vmem:[%s168] ss:$4 sm:$0xff] %v146
      %s170 = scalar_lea.vmem [#allocation1], 33
      %171 = vst [vmem:[%s170] ss:$4 sm:$0xff] %v148
      %s172 = scalar_lea.vmem [#allocation1], 34
      %173 = vst [vmem:[%s172] ss:$4 sm:$0xff] %v150
      %s174 = scalar_lea.vmem [#allocation1], 35
      %175 = vst [vmem:[%s174] ss:$4 sm:$0xff] %v152
      %v176 = vld.sshfl [vmem:[#allocation1] sm:$0xff pattern:$0x73625140]
      %v177 = vld.sshfl [vmem:[#allocation1 + $0x8] sm:$0xff pattern:$0x73625140]
      %v178 = vld.sshfl [vmem:[#allocation1 + $0x10] sm:$0xff pattern:$0x73625140]
      %v179 = vld.sshfl [vmem:[#allocation1 + $0x18] sm:$0xff pattern:$0x73625140]
      %v180 = vld.sshfl [vmem:[#allocation1 + $0x20] sm:$0xff pattern:$0x73625140]
      %v181 = vld.sshfl [vmem:[#allocation1 + $0x28] sm:$0xff pattern:$0x73625140]
      %v182 = vld.sshfl [vmem:[#allocation1 + $0x30] sm:$0xff pattern:$0x73625140]
      %v183 = vld.sshfl [vmem:[#allocation1 + $0x38] sm:$0xff pattern:$0x73625140]
      %v192 = vsel %vm137, %v176, 0.0
      %v193 = vsel %vm138, %v177, 0.0
      %v194 = vsel %vm139, %v178, 0.0
      %v195 = vsel %vm140, %v179, 0.0
      %v196 = vsel %vm141, %v180, 0.0
      %v197 = vsel %vm142, %v181, 0.0
      %v198 = vsel %vm143, %v182, 0.0
      %v199 = vsel %vm144, %v183, 0.0
      %v200 = vld [vmem:[%s1] sm:$0xff]
      %v201 = vadd.f32 %v192, %v193
      %v202 = vadd.f32 %v201, %v194
      %v203 = vadd.f32 %v202, %v195
      %v204 = vadd.f32 %v203, %v196
      %v205 = vadd.f32 %v204, %v197
      %v206 = vadd.f32 %v205, %v198
      %v207 = vadd.f32 %v206, %v199
      %208 = vadd.xlane.f32.xlu0 %v207
      %v209 = vpop.xlane.xlu0 %208
      %v210 = vadd.f32 %v200, %v209
      %vm211 = vcmask 7168
      %212 = vst.msk [vmem:[%s1] sm:$0xff] %vm211, %v210
    $region21: #{tpu_custom_call.1} parent=1 // pred_fallthru
      _
    // Predicated region
    $region22: #{tpu_custom_call.1} parent=1 // pred_check
      _
    $region23: #{tpu_custom_call.1} parent=1 // pred_check_branch
      %214 = sbr.rel (0) target = $region25
    $region24: #{tpu_custom_call.1} parent=1 // pred_region
      _
    $region25: #{tpu_custom_call.1} parent=1 // pred_fallthru
      _
    // Predicated region
    $region26: #{tpu_custom_call.1} parent=1 // pred_check
      _
    $region27: #{tpu_custom_call.1} parent=1 // pred_check_branch
      %216 = sbr.rel (0) target = $region29
    $region28: #{tpu_custom_call.1} parent=1 // pred_region
      _
    $region29: #{tpu_custom_call.1} parent=1 // pred_fallthru
      _
    %217 = vsyncpa [#allocation3], 1

</llo_original>
